<compile_context>
chip_gen: v5e
topology: v5e:2x2
jax: 0.10.0
libtpu: 0.0.40
codegen_flags: <defaults>
</compile_context>

<pallas_src>
import functools
import math

import jax
import jax.numpy as jnp
from jax.experimental import pallas as pl
from jax.experimental.pallas import tpu as pltpu


def _cdiv(a, b):
    return (a + b - 1) // b


def _round_up(x, m):
    return _cdiv(x, m) * m


def _pos_enc_kernel(params_ref, rc1_ref, out_ref, *, block_rows):
    """Compute one [TL, W] lane-dense slab of the sin/cos positional encoding.

    params_ref: [2, W] float32 per-lane constants
        row 0: c0[j] = (w-1 - j//C) * coef[j%C] + phase[j%C]
        row 1: c1[j] = G * coef[j%C]
    rc1_ref:    [TL, W] float32 resident ramp, rc1[s, j] = s * c1[j]
    out_ref:    [TL, W] float32; slab row r covers logical rows r*G .. r*G+G-1.
    """
    c0 = params_ref[0:1, :]                               # [1, W]
    c1 = params_ref[1:2, :]                               # [1, W]

    # Per-tile [1, W] setup: absolute slab-row base folded into the constant.
    base = (pl.program_id(0) * block_rows).astype(jnp.float32)
    row0 = c0 - base * c1                                  # [1, W]

    # Per element: one VALU subtract + one sin.
    out_ref[...] = jnp.sin(row0 - rc1_ref[...])


def position_encoding_sine_1d_relative(w, scale, num_pos_feats=64,
                                       temperature=10000.0, block_rows=2048):
    """Relative 1D sine positional encoding, shape [2*w - 1, num_pos_feats] (f32)."""
    L = 2 * w - 1
    C = num_pos_feats

    # Lane-dense packing for any C: W = lcm(C, 128), G logical rows per slab row.
    W = C * (128 // math.gcd(C, 128))
    G = W // C

    # ---- Host-side per-lane constants (tiny [2, W] + [TL, W] DMAs) ----------
    dim_i = jnp.arange(C, dtype=jnp.float32)
    dim_t = jnp.float32(temperature) ** (2.0 * jnp.floor(dim_i / 2.0) / jnp.float32(C))
    coef = jnp.float32(scale) / dim_t                                    # [C]

    lane = jnp.arange(W, dtype=jnp.int32)
    chan = lane % C
    subrow = (lane // C).astype(jnp.float32)                             # [W]
    coef_l = coef[chan]                                                  # [W]
    phase = jnp.where(chan % 2 == 1, jnp.float32(jnp.pi / 2.0), jnp.float32(0.0))

    c0 = (jnp.float32(w - 1) - subrow) * coef_l + phase                  # [W]
    c1 = jnp.float32(G) * coef_l                                         # [W]
    params = jnp.stack([c0, c1], axis=0).astype(jnp.float32)             # [2, W]

    # ---- Tiling over slab rows ----------------------------------------------
    R = _cdiv(L, G)                                        # slab rows needed
    # Cap tile by a ~1 MiB-per-buffer VMEM budget (keeps big-W cases safe).
    vmem_rows = max(8, ((1 << 20) // (4 * W)) // 8 * 8)
    tl = min(block_rows, vmem_rows)
    # Ensure >= 2 grid blocks whenever possible so v7x shards across both TCs.
    if R > 8:
        tl = min(tl, _round_up(_cdiv(R, 2), 8))
    TL = _round_up(max(8, min(tl, _round_up(R, 8))), 8)
    num_blocks = _cdiv(R, TL)
    R_pad = num_blocks * TL

    # Resident sublane ramp premultiplied by c1 (fetched once, stays in VMEM).
    rc1 = (jnp.arange(TL, dtype=jnp.float32)[:, None] * c1[None, :]).astype(jnp.float32)

    kernel = functools.partial(_pos_enc_kernel, block_rows=TL)
    slab = pl.pallas_call(
        kernel,
        out_shape=jax.ShapeDtypeStruct((R_pad, W), jnp.float32),
        grid=(num_blocks,),
        in_specs=[pl.BlockSpec((2, W), lambda i: (0, 0)),
                  pl.BlockSpec((TL, W), lambda i: (0, 0))],
        out_specs=pl.BlockSpec((TL, W), lambda i: (i, 0)),
        compiler_params=pltpu.CompilerParams(
            dimension_semantics=("parallel",)),
    )(params, rc1)

    # [R_pad, W] -> [R_pad*G, C] is a contiguous row-major reshape; drop pad rows.
    # NOTE: call under jit with the consumer so this slice fuses (otherwise it
    # costs one extra HBM round-trip for the whole array).
    return slab.reshape(R_pad * G, C)[:L]


def _reference(w, scale, num_pos_feats=64, temperature=10000.0):
    """Pure-JAX reference mirroring the PyTorch forward exactly."""
    L = 2 * w - 1
    C = num_pos_feats
    x_embed = jnp.linspace(float(w - 1), float(-w + 1), L, dtype=jnp.float32) * jnp.float32(scale)
    dim_i = jnp.arange(C, dtype=jnp.float32)
    dim_t = jnp.float32(temperature) ** (2.0 * jnp.floor(dim_i / 2.0) / jnp.float32(C))
    pos_x = x_embed[:, None] / dim_t[None, :]
    pos = jnp.stack((jnp.sin(pos_x[:, 0::2]), jnp.cos(pos_x[:, 1::2])), axis=2).reshape(L, C)
    return pos


if __name__ == "__main__":
    # Small deterministic example: w=16 spatial width, C=32 features.
    key = jax.random.PRNGKey(0)
    w = 16
    num_pos_feats = 32
    # scale is a runtime argument of the module; draw it deterministically.
    scale = float(jax.random.uniform(key, (), minval=0.5, maxval=2.0))

    pos = position_encoding_sine_1d_relative(w, scale, num_pos_feats=num_pos_feats)
    pos = jax.block_until_ready(pos)

    ref = _reference(w, scale, num_pos_feats=num_pos_feats)
    assert pos.shape == (2 * w - 1, num_pos_feats), pos.shape
    assert pos.dtype == jnp.float32
    max_err = float(jnp.max(jnp.abs(pos - ref)))
    assert max_err < 1e-4, f"max abs error {max_err}"

    # A second, larger check (more slab rows -> multi-block grid path).
    w2 = 640
    pos2 = jax.block_until_ready(
        position_encoding_sine_1d_relative(w2, scale, num_pos_feats=num_pos_feats))
    ref2 = _reference(w2, scale, num_pos_feats=num_pos_feats)
    assert pos2.shape == (2 * w2 - 1, num_pos_feats)
    max_err2 = float(jnp.max(jnp.abs(pos2 - ref2)))
    assert max_err2 < 2e-4, f"max abs error (large w) {max_err2}"

    print("KERNEL_OK")
</pallas_src>

<mosaic_0001>
module attributes {stable_mosaic.version = 11 : i64} {
  func.func @_pos_enc_kernel(%arg0: i32, %arg1: memref<2x128xf32, #tpu.memory_space<vmem>>, %arg2: memref<8x128xf32, #tpu.memory_space<vmem>>, %arg3: memref<8x128xf32, #tpu.memory_space<vmem>>) attributes {dimension_semantics = [#tpu.dimension_semantics<parallel>], iteration_bounds = array<i64: 1>, scalar_prefetch = 0 : i64, scratch_operands = 0 : i64, tpu.core_type = #tpu.core_type<tc>, window_params = [{pipeline_mode = #tpu.pipeline_mode<synchronous>, transform_indices = @transform_0, window_bounds = array<i64: 2, 128>}, {pipeline_mode = #tpu.pipeline_mode<synchronous>, transform_indices = @transform_1, window_bounds = array<i64: 8, 128>}, {transform_indices = @transform_2, window_bounds = array<i64: 8, 128>}]} {
    %c0 = arith.constant 0 : index
    %c0_0 = arith.constant 0 : index
    %0 = vector.load %arg1[%c0, %c0_0] : memref<2x128xf32, #tpu.memory_space<vmem>>, vector<1x128xf32>
    %c1 = arith.constant 1 : index
    %c0_1 = arith.constant 0 : index
    %1 = vector.load %arg1[%c1, %c0_1] : memref<2x128xf32, #tpu.memory_space<vmem>>, vector<1x128xf32>
    %c8_i32 = arith.constant 8 : i32
    %2 = arith.muli %arg0, %c8_i32 : i32
    %3 = arith.sitofp %2 : i32 to f32
    %4 = vector.broadcast %3 : f32 to vector<1x128xf32>
    %5 = arith.mulf %4, %1 : vector<1x128xf32>
    %6 = arith.subf %0, %5 : vector<1x128xf32>
    %c0_2 = arith.constant 0 : index
    %c0_3 = arith.constant 0 : index
    %7 = vector.load %arg2[%c0_2, %c0_3] : memref<8x128xf32, #tpu.memory_space<vmem>>, vector<8x128xf32>
    %8 = vector.broadcast %6 : vector<1x128xf32> to vector<8x128xf32>
    %9 = arith.subf %8, %7 : vector<8x128xf32>
    %10 = math.sin %9 : vector<8x128xf32>
    %c0_4 = arith.constant 0 : index
    %c0_5 = arith.constant 0 : index
    %11 = vector.load %arg3[%c0_4, %c0_5] : memref<8x128xf32, #tpu.memory_space<vmem>>, vector<8x128xf32>
    tpu.vector_store %arg3[%c0_4, %c0_5], %10 {strides = array<i32>} : memref<8x128xf32, #tpu.memory_space<vmem>>, vector<8x128xf32>,
    return
  }
  func.func @transform_0(%arg0: i32) -> (i32, i32) {
    %c0_i32 = arith.constant 0 : i32
    %c0_i32_0 = arith.constant 0 : i32
    %c0_i32_1 = arith.constant 0 : i32
    return %c0_i32, %c0_i32_0 : i32, i32
  }
  func.func @transform_1(%arg0: i32) -> (i32, i32) {
    %c0_i32 = arith.constant 0 : i32
    %c0_i32_0 = arith.constant 0 : i32
    %c0_i32_1 = arith.constant 0 : i32
    return %c0_i32, %c0_i32_0 : i32, i32
  }
  func.func @transform_2(%arg0: i32) -> (i32, i32) {
    %c0_i32 = arith.constant 0 : i32
    %c0_i32_0 = arith.constant 0 : i32
    return %arg0, %c0_i32 : i32, i32
  }
}

</mosaic_0001>

<llo_original>
// kernel: tpu_custom_call.1
$region0: #{tpu_custom_call.1}
  #allocation0 [shape = 'u32[]', space=smem, size = 0x4, offset = 0x4, fixed_abs, tag = 'smem constant byte address 0x4 - core index']
  #allocation1 [shape = 'u32[72,128]{1,0:T(1,128)}', space=vmem, size = 0x9000, scoped, tag = 'internal scratch']
  %s0 = inlined_call_operand.hbm [shape: f32[2,128], index: 0, kind: input, shape index: {}]
  %s1 = inlined_call_operand.hbm [shape: f32[8,128], index: 1, kind: input, shape index: {}]
  %s2 = inlined_call_operand.hbm [shape: f32[8,128], index: 2, kind: output, shape index: {}]
  %s3 = sld [smem:[#allocation0]]
  $region26: #{tpu_custom_call.1} parent=0
    _
  %s5 = ssub.s32 1, %s3
  %s6 = scalar_select 0, %s5, %s3
  $region1: #{tpu_custom_call.1} parent=0
    #allocation2 [shape = 'u8[1024]{0}', space=vmem, size = 0x400, scoped, tag = 'input window, operand 0, single buffered']
    #allocation3 [shape = 's32[1]{0}', space=sflag, size = 0x4, scoped, tag = 'scoped memory for tpu_custom_call.1']
    #allocation4 [shape = 's32[1]{0}', space=sflag, size = 0x4, scoped, tag = 'scoped memory for tpu_custom_call.1']
    #allocation5 [shape = 'u8[4096]{0}', space=vmem, size = 0x1000, scoped, tag = 'input window, operand 1, single buffered']
    #allocation6 [shape = 's32[1]{0}', space=sflag, size = 0x4, scoped, tag = 'scoped memory for tpu_custom_call.1']
    #allocation7 [shape = 'u8[4096]{0}', space=vmem, size = 0x1000, scoped, tag = 'output window, operand 0, single buffered']
    %7 = vsyncpa [#allocation3], 0
    %8 = vsyncpa [#allocation6], 0
    %9 = vsyncpa [#allocation4], 0
    // Predicated region
    $region2: #{tpu_custom_call.1} parent=1 // pred_check
      _
    $region3: #{tpu_custom_call.1} parent=1 // pred_check_branch
      %11 = sbr.rel (0) target = $region5
    $region4: #{tpu_custom_call.1} parent=1 // pred_region
      %13 = vsyncadd [#allocation3], 0
      %s15 = sshll.u32 %s0, 4
      %s16 = int_to_ptr.hbm [resolvable:$true] %s15
      %s17 = sshll.u32 [#allocation2], 4
      %s18 = int_to_ptr.vmem [resolvable:$true] %s17
      %20 = dma.hbm_to_vmem [thread:$0]  %s16, 32, %s18, [#allocation3]
    $region5: #{tpu_custom_call.1} parent=1 // pred_fallthru
      _
    // Predicated region
    $region6: #{tpu_custom_call.1} parent=1 // pred_check
      _
    $region7: #{tpu_custom_call.1} parent=1 // pred_check_branch
      %22 = sbr.rel (0) target = $region9
    $region8: #{tpu_custom_call.1} parent=1 // pred_region
      %24 = vsyncadd [#allocation6], 0
      %s26 = sshll.u32 %s1, 4
      %s27 = int_to_ptr.hbm [resolvable:$true] %s26
      %s28 = sshll.u32 [#allocation5], 4
      %s29 = int_to_ptr.vmem [resolvable:$true] %s28
      %31 = dma.hbm_to_vmem [thread:$0]  %s27, 128, %s29, [#allocation6]
    $region9: #{tpu_custom_call.1} parent=1 // pred_fallthru
      _
    // Predicated region
    $region10: #{tpu_custom_call.1} parent=1 // pred_check
      _
    $region11: #{tpu_custom_call.1} parent=1 // pred_check_branch
      %33 = sbr.rel (0) target = $region13
    $region12: #{tpu_custom_call.1} parent=1 // pred_region
      %35 = dma.done [#allocation3], 32
    $region13: #{tpu_custom_call.1} parent=1 // pred_fallthru
      _
    // Predicated region
    $region14: #{tpu_custom_call.1} parent=1 // pred_check
      _
    $region15: #{tpu_custom_call.1} parent=1 // pred_check_branch
      %37 = sbr.rel (0) target = $region17
    $region16: #{tpu_custom_call.1} parent=1 // pred_region
      %39 = dma.done [#allocation6], 128
    $region17: #{tpu_custom_call.1} parent=1 // pred_fallthru
      _
    %v40 = vld [vmem:[#allocation2] sm:$0x1]
    %v41 = vld [vmem:[#allocation2 + $0x1] sm:$0x1]
    %s42 = smul.u32 0, 8
    %s43 = scvt.s32.f32 %s42
    %v44 = vstv %s43
    %v45 = vmul.f32 %v44, %v41
    %v46 = vsub.f32 %v40, %v45
    %v47 = vld [vmem:[#allocation5] sm:$0xff]
    %v48 = vperm.slane %v46, 0
    %v49 = vsub.f32 %v48, %v47
    %v50 = vand.u32 2147483647, %v49
    %vm51 = vcmp.le.f32.partialorder %v50, 0.7853982
    %vm52 = vcmp.lt.s32.totalorder %v49, 0
    %v53 = vand.u32 %v49, 2139095040
    %v54 = vshrl.u32 %v53, 23
    %v55 = vsub.s32 %v54, 127
    %v56 = vand.u32 2147483647, %v49
    %v57 = vand.u32 %v56, 8388607
    %v58 = vor.u32 %v57, 8388608
    %v59 = vsub.s32 0, %v58
    %v60 = vadd.s32 %v55, 1
    %vm61 = vcmp.gt.s32.totalorder %v60, 0
    %v62 = vsel %vm61, %v60, 0
    %v63 = vshrl.u32 %v62, 5
    %v64 = vand.u32 %v62, 31
    %v65 = vsub.s32 32, %v64
    %v66 = vshrl.u32 683565275, %v65
    %v67 = vshll.u32 683565275, %v64
    %v68 = vshrl.u32 2475754826, %v65
    %v69 = vor.u32 %v67, %v68
    %v70 = vshll.u32 2475754826, %v64
    %v71 = vshrl.u32 2131351028, %v65
    %v72 = vor.u32 %v70, %v71
    %v73 = vshll.u32 2131351028, %v64
    %v74 = vshrl.u32 2102212464, %v65
    %v75 = vor.u32 %v73, %v74
    %v76 = vshll.u32 2102212464, %v64
    %v77 = vshrl.u32 920167782, %v65
    %v78 = vor.u32 %v76, %v77
    %v79 = vshll.u32 920167782, %v64
    %v80 = vshrl.u32 1326507024, %v65
    %v81 = vor.u32 %v79, %v80
    %vm82 = vcmp.lt.s32.totalorder %v63, 1
    %vm83 = vcmp.lt.s32.totalorder %v63, 2
    %vm84 = vcmp.lt.s32.totalorder %v63, 3
    %vm85 = vcmp.lt.s32.totalorder %v63, 4
    %v86 = vsel %vm82, %v66, %v69
    %v87 = vsel %vm85, %v75, 2102212464
    %v88 = vsel %vm84, %v72, %v87
    %v89 = vsel %vm83, %v86, %v88
    %v90 = vsel %vm82, %v69, %v72
    %v91 = vsel %vm85, %v78, 920167782
    %v92 = vsel %vm84, %v75, %v91
    %v93 = vsel %vm83, %v90, %v92
    %v94 = vsel %vm82, %v72, %v75
    %v95 = vsel %vm85, %v81, 1326507024
    %v96 = vsel %vm84, %v78, %v95
    %v97 = vsel %vm83, %v94, %v96
    %v98 = vshll.u32 %v58, 8
    %v99 = vand.u32 %v98, 65535
    %v100 = vshrl.u32 %v98, 16
    %v101 = vand.u32 %v97, 65535
    %v102 = vshrl.u32 %v97, 16
    %v103 = vmul.u32 %v99, %v101
    %v104 = vmul.u32 %v99, %v102
    %v105 = vmul.u32 %v100, %v101
    %v106 = vmul.u32 %v100, %v102
    %v107 = vshll.u32 %v104, 16
    %v108 = vshrl.u32 %v104, 16
    %v109 = vshll.u32 %v105, 16
    %v110 = vshrl.u32 %v105, 16
    %vm111 = vc.u32 %v103, %v107
    %v112 = vsel %vm111, 1, 0
    %v113 = vadd.s32 %v103, %v107
    %v114 = vadd.s32 %v106, %v112
    %vm115 = vc.u32 %v113, %v109
    %v116 = vsel %vm115, 1, 0
    %v117 = vadd.s32 %v113, %v109
    %v118 = vadd.s32 %v114, %v116
    %v119 = vadd.s32 %v118, %v108
    %v120 = vadd.s32 %v119, %v110
    %v121 = vand.u32 %v98, 65535
    %v122 = vshrl.u32 %v98, 16
    %v123 = vand.u32 %v93, 65535
    %v124 = vshrl.u32 %v93, 16
    %v125 = vmul.u32 %v121, %v123
    %v126 = vmul.u32 %v121, %v124
    %v127 = vmul.u32 %v122, %v123
    %v128 = vmul.u32 %v122, %v124
    %v129 = vshll.u32 %v126, 16
    %v130 = vshrl.u32 %v126, 16
    %v131 = vshll.u32 %v127, 16
    %v132 = vshrl.u32 %v127, 16
    %vm133 = vc.u32 %v125, %v129
    %v134 = vsel %vm133, 1, 0
    %v135 = vadd.s32 %v125, %v129
    %v136 = vadd.s32 %v128, %v134
    %vm137 = vc.u32 %v135, %v131
    %v138 = vsel %vm137, 1, 0
    %v139 = vadd.s32 %v135, %v131
    %v140 = vadd.s32 %v136, %v138
    %v141 = vadd.s32 %v140, %v130
    %v142 = vadd.s32 %v141, %v132
    %v143 = vmul.u32 %v98, %v89
    %v144 = vadd.s32 %v120, %v139
    %vm145 = vc.u32 %v120, %v139
    %v146 = vadd.s32 %v142, 1
    %v147 = vsel %vm145, %v146, %v142
    %v148 = vadd.s32 %v143, %v147
    %v149 = vadd.s32 %v148, 536870912
    %v150 = vshrl.u32 %v149, 30
    %v151 = vshll.u32 %v150, 30
    %v152 = vsub.s32 %v148, %v151
    %vm153 = vcmp.lt.s32.totalorder %v152, 0
    %v154 = vsub.s32 0, %v152
    %v155 = vsel %vm153, %v154, %v152
    %v156 = vclz %v155
    %v157 = vsub.s32 %v156, 2
    %vm158 = vcmp.gt.s32.totalorder 0, %v157
    %v159 = vsel %vm158, 0, %v157
    %v160 = vsub.s32 32, %v159
    %v161 = vshll.u32 %v152, %v159
    %v162 = vshrl.u32 %v144, %v160
    %v163 = vor.u32 %v161, %v162
    %v164 = vsub.s32 4294967266, %v159
    %v165 = vadd.s32 %v164, 127
    %v166 = vshll.u32 %v165, 23
    %v167 = vor.u32 4788187, %v166
    %v168 = vand.u32 2147483647, %v167
    %v170 = vcvt.s32.f32 %v163
    %v171 = vmul.f32 %v170, %v168
    %v172 = vxor.u32 %v171, 2147483648
    %v173 = vsel %vm52, %v172, %v171
    %v174 = vsub.s32 4, %v150
    %v175 = vsel %vm52, %v174, %v150
    %v176 = vsel %vm51, %v49, %v173
    %v177 = vsel %vm51, 0, %v175
    %v178 = vmul.f32 %v176, %v176
    %v179 = vmul.f32 %v178, -0.001358992
    %v180 = vadd.f32 %v179, 0.041655596
    %v181 = vmul.f32 %v178, %v180
    %v182 = vadd.f32 %v181, -0.4999988
    %v183 = vmul.f32 %v178, %v182
    %v184 = vadd.f32 1.0, %v183
    %v185 = vmul.f32 %v176, %v176
    %v186 = vmul.f32 %v185, -0.00019511016
    %v187 = vadd.f32 %v186, 0.008332121
    %v188 = vmul.f32 %v185, %v187
    %v189 = vadd.f32 %v188, -0.16666654
    %v190 = vmul.f32 %v185, %v189
    %v191 = vadd.f32 %v190, 1.0
    %v192 = vmul.f32 %v191, %v176
    %vm193 = vweird.f32 %v49
    %v194 = vadd.s32 %v177, 3
    %v195 = vand.u32 %v194, 3
    %vm196 = vcmp.lt.s32.totalorder %v195, 2
    %vm197 = vcmp.eq.s32.totalorder %v195, 0
    %v198 = vxor.u32 %v192, 2147483648
    %v199 = vsel %vm197, %v184, %v198
    %vm200 = vcmp.eq.s32.totalorder %v195, 2
    %v201 = vxor.u32 %v184, 2147483648
    %v202 = vsel %vm200, %v201, %v192
    %v203 = vsel %vm196, %v199, %v202
    %v204 = vsel %vm193, nan, %v203
    %205 = vst [vmem:[#allocation7] sm:$0xff] %v204
    // Predicated region
    $region18: #{tpu_custom_call.1} parent=1 // pred_check
      _
    $region19: #{tpu_custom_call.1} parent=1 // pred_check_branch
      %207 = sbr.rel (0) target = $region21
    $region20: #{tpu_custom_call.1} parent=1 // pred_region
      %209 = vsyncadd [#allocation4], 0
      %s211 = sshll.u32 [#allocation7], 4
      %s212 = int_to_ptr.vmem [resolvable:$true] %s211
      %s213 = sshll.u32 %s2, 4
      %s214 = int_to_ptr.hbm [resolvable:$true] %s213
      %216 = dma.vmem_to_hbm [thread:$0]  %s212, 128, %s214, [#allocation4]
    $region21: #{tpu_custom_call.1} parent=1 // pred_fallthru
      _
    // Predicated region
    $region22: #{tpu_custom_call.1} parent=1 // pred_check
      _
    $region23: #{tpu_custom_call.1} parent=1 // pred_check_branch
      %218 = sbr.rel (0) target = $region25
    $region24: #{tpu_custom_call.1} parent=1 // pred_region
      %220 = dma.done [#allocation4], 128
    $region25: #{tpu_custom_call.1} parent=1 // pred_fallthru
      _
    %221 = vsyncpa [#allocation3], 1
    %222 = vsyncpa [#allocation6], 1
    %223 = vsyncpa [#allocation4], 1

</llo_original>
